<compile_context>
chip_gen: v7x
topology: tpu7x:2x2x1
jax: 0.10.0
libtpu: 0.0.40
codegen_flags: <defaults>
</compile_context>

<pallas_src>
import functools

import jax
import jax.numpy as jnp
from jax import lax
from jax.experimental import pallas as pl
from jax.experimental.pallas import tpu as pltpu

_BN_EPS = 1e-5


def _round_up(x, m):
    return (x + m - 1) // m * m


# ------------------------------ Pallas kernel -------------------------------

def _double_conv_kernel(x_ref, w1_ref, b1_ref, w2_ref, b2_ref, o_ref,
                        buf1, buf2, *, H, W, LPAD):
    # x_ref  : (1, CinP, H*W)      one image; channels on sublanes, pixels on lanes
    # wK_ref : (CoutKP, 9*CinKP)   im2col weight, K ordered (dx, dy, cin), BN scale folded
    # bK_ref : (CoutKP, 1)         folded BN bias (includes conv bias)
    # o_ref  : (1, Cout2, H*W)
    # bufK   : (CinKP, LPAD + H*W + W + 1) zero-margined row buffer (VMEM scratch)
    HW = H * W
    cdt = buf1.dtype

    # Edge masks: kill the dx=-1 / dx=+1 row wrap-around of the flattened layout.
    col = lax.broadcasted_iota(jnp.int32, (1, HW), 1)
    col = (col & (W - 1)) if (W & (W - 1)) == 0 else (col % W)
    not_left = (col != 0).astype(cdt)            # (1, HW): 0 at image column 0
    not_right = (col != W - 1).astype(cdt)       # (1, HW): 0 at image column W-1

    def stage(buf, interior):
        c, l = buf.shape
        # Only the margins need zeros; the interior is fully overwritten each step.
        buf[:, 0:LPAD] = jnp.zeros((c, LPAD), cdt)
        buf[:, LPAD + HW:l] = jnp.zeros((c, l - LPAD - HW), cdt)
        buf[:, LPAD:LPAD + HW] = interior.astype(cdt)

    def conv_bn_relu(buf, w_ref, b_ref):
        # im2col stack (dx-major) -> single (Cout, 9*CinP) x (9*CinP, HW) matmul.
        groups = []
        for dx in range(3):
            g = jnp.concatenate(
                [buf[:, LPAD + (dy - 1) * W + (dx - 1):
                        LPAD + (dy - 1) * W + (dx - 1) + HW]
                 for dy in range(3)],
                axis=0)                                   # (3*cinP, HW)
            if dx == 0:
                g = g * not_left                          # one masked multiply / group
            elif dx == 2:
                g = g * not_right
            groups.append(g)
        stacked = jnp.concatenate(groups, axis=0)         # (9*cinP, HW)
        y = jnp.dot(w_ref[...], stacked,                  # one MXU push per conv
                    preferred_element_type=jnp.float32)
        return jnp.maximum(y + b_ref[...], 0.0)           # (coutP, HW) f32

    # ---- conv1 + BN + ReLU ---------------------------------------------------
    stage(buf1, x_ref[0])
    y1 = conv_bn_relu(buf1, w1_ref, b1_ref)

    # ---- conv2 + BN + ReLU (intermediate never leaves VMEM) -------------------
    stage(buf2, y1)
    y2 = conv_bn_relu(buf2, w2_ref, b2_ref)

    o_ref[0] = y2.astype(o_ref.dtype)


# -------------------------------- wrapper -----------------------------------

def _fold_bn(gamma, beta, mean, var, conv_b):
    scale = gamma / jnp.sqrt(var + _BN_EPS)
    bias = beta + scale * (conv_b - mean)
    return scale, bias


def _pack_weight(w_oihw, scale, cin_pad, cout_pad, dtype):
    # (Cout, Cin, 3, 3) * scale[Cout]  ->  (Cout_pad, 9*Cin_pad), K ordered (dx, dy, cin)
    co, ci = w_oihw.shape[0], w_oihw.shape[1]
    w = w_oihw * scale[:, None, None, None]               # fold BN scale into the conv
    w = jnp.transpose(w, (0, 3, 2, 1))                    # (co, kx, ky, ci)
    w = jnp.pad(w, ((0, cout_pad - co), (0, 0), (0, 0), (0, cin_pad - ci)))
    return w.reshape(cout_pad, 9 * cin_pad).astype(dtype)


def double_conv_forward(x_nchw, p, *, compute_dtype=jnp.float32):
    """[conv3x3(pad=1) -> BN(eval) -> ReLU] x 2 fused into one pallas_call.

    NCHW in, NCHW out — same layout/dtype as the PyTorch module.
    compute_dtype controls matmul-operand/staging dtype (bf16 recommended on
    v6e/v7x; f32 accumulation is preserved via preferred_element_type)."""
    N, Cin, H, W = x_nchw.shape
    C1 = p["w1"].shape[0]
    C2 = p["w2"].shape[0]
    HW = H * W
    CinP = _round_up(Cin, 8)              # padded channels -> tile-aligned sublane ops
    C1P = _round_up(C1, 8)
    LPAD = pl.cdiv(W + 1, 128) * 128      # left margin; keeps staging store 128-aligned
    L = LPAD + HW + W + 1                 # zero-margined row-buffer length

    # Fold BN (eval mode) into weights/bias; pack weights for the single matmul.
    s1, b1 = _fold_bn(p["gamma1"], p["beta1"], p["mean1"], p["var1"], p["b1"])
    s2, b2 = _fold_bn(p["gamma2"], p["beta2"], p["mean2"], p["var2"], p["b2"])
    w1 = _pack_weight(p["w1"], s1, CinP, C1P, compute_dtype)    # (C1P, 9*CinP)
    w2 = _pack_weight(p["w2"], s2, C1P, C2, compute_dtype)      # (C2 , 9*C1P)
    b1 = jnp.pad(b1, (0, C1P - C1)).reshape(C1P, 1)  # padded rows: ReLU(0+0)=0 -> inert
    b2 = b2.reshape(C2, 1)

    x_flat = x_nchw.reshape(N, Cin, HW)   # free reshape, lane-dense (last dim = HW)
    if CinP > Cin:                        # tiny zero channel-pad keeps kernel aligned
        x_flat = jnp.pad(x_flat, ((0, 0), (0, CinP - Cin), (0, 0)))

    kernel = functools.partial(_double_conv_kernel, H=H, W=W, LPAD=LPAD)
    bcast2 = lambda n: (0, 0)

    out = pl.pallas_call(
        kernel,
        out_shape=jax.ShapeDtypeStruct((N, C2, HW), x_nchw.dtype),
        grid=(N,),
        in_specs=[
            pl.BlockSpec((1, CinP, HW), lambda n: (n, 0, 0)),
            pl.BlockSpec((C1P, 9 * CinP), bcast2),
            pl.BlockSpec((C1P, 1), bcast2),
            pl.BlockSpec((C2, 9 * C1P), bcast2),
            pl.BlockSpec((C2, 1), bcast2),
        ],
        out_specs=pl.BlockSpec((1, C2, HW), lambda n: (n, 0, 0)),
        scratch_shapes=[
            pltpu.VMEM((CinP, L), compute_dtype),
            pltpu.VMEM((C1P, L), compute_dtype),
        ],
        compiler_params=pltpu.CompilerParams(
            dimension_semantics=("parallel",)),
    )(x_flat, w1, b1, w2, b2)

    return out.reshape(N, C2, H, W)       # free reshape back to NCHW


# ----------------------------- parameter setup ------------------------------

def init_double_conv_params(key, in_ch, out_ch):
    ks = jax.random.split(key, 12)
    p = {}
    for i, (ci, co) in enumerate([(in_ch, out_ch), (out_ch, out_ch)], start=1):
        k = 6 * (i - 1)
        p[f"w{i}"] = jax.random.normal(ks[k + 0], (co, ci, 3, 3), jnp.float32) * 0.2
        p[f"b{i}"] = jax.random.normal(ks[k + 1], (co,), jnp.float32) * 0.1
        p[f"gamma{i}"] = jax.random.uniform(ks[k + 2], (co,), jnp.float32, 0.5, 1.5)
        p[f"beta{i}"] = jax.random.normal(ks[k + 3], (co,), jnp.float32) * 0.1
        p[f"mean{i}"] = jax.random.normal(ks[k + 4], (co,), jnp.float32) * 0.1
        p[f"var{i}"] = jax.random.uniform(ks[k + 5], (co,), jnp.float32, 0.5, 1.5)
    return p


# --------------------------- pure-JAX reference ------------------------------

def _ref_forward(x_nchw, p):
    x = x_nchw
    for i in (1, 2):
        x = lax.conv_general_dilated(
            x, p[f"w{i}"], window_strides=(1, 1), padding="SAME",
            dimension_numbers=("NCHW", "OIHW", "NCHW"),
            precision=lax.Precision.HIGHEST)
        x = x + p[f"b{i}"][None, :, None, None]
        x = (x - p[f"mean{i}"][None, :, None, None]) / jnp.sqrt(
            p[f"var{i}"][None, :, None, None] + _BN_EPS)
        x = x * p[f"gamma{i}"][None, :, None, None] + p[f"beta{i}"][None, :, None, None]
        x = jnp.maximum(x, 0.0)
    return x


# ----------------------------------- main ------------------------------------

if __name__ == "__main__":
    key = jax.random.PRNGKey(0)
    kx, kp = jax.random.split(key)

    in_ch, out_ch = 4, 8
    x = jax.random.normal(kx, (2, in_ch, 16, 16), jnp.float32)   # NCHW
    params = init_double_conv_params(kp, in_ch, out_ch)

    out = jax.block_until_ready(double_conv_forward(x, params))
    assert out.shape == (2, out_ch, 16, 16), out.shape

    ref = _ref_forward(x, params)
    max_err = float(jnp.max(jnp.abs(out - ref)))
    assert max_err < 1e-2, f"mismatch vs reference: {max_err}"

    print("KERNEL_OK")
</pallas_src>

<mosaic_0001>
module attributes {stable_mosaic.version = 11 : i64} {
  func.func @_double_conv_kernel(%arg0: i32, %arg1: memref<1x8x256xf32, #tpu.memory_space<vmem>>, %arg2: memref<8x72xf32, #tpu.memory_space<vmem>>, %arg3: memref<8x1xf32, #tpu.memory_space<vmem>>, %arg4: memref<8x72xf32, #tpu.memory_space<vmem>>, %arg5: memref<8x1xf32, #tpu.memory_space<vmem>>, %arg6: memref<1x8x256xf32, #tpu.memory_space<vmem>>, %arg7: memref<8x401xf32, #tpu.memory_space<vmem>>, %arg8: memref<8x401xf32, #tpu.memory_space<vmem>>) attributes {dimension_semantics = [#tpu.dimension_semantics<parallel>], iteration_bounds = array<i64: 2>, scalar_prefetch = 0 : i64, scratch_operands = 2 : i64, tpu.core_type = #tpu.core_type<tc>, window_params = [{transform_indices = @transform_0, window_bounds = array<i64: 1, 8, 256>}, {pipeline_mode = #tpu.pipeline_mode<synchronous>, transform_indices = @transform_1, window_bounds = array<i64: 8, 72>}, {pipeline_mode = #tpu.pipeline_mode<synchronous>, transform_indices = @transform_2, window_bounds = array<i64: 8, 1>}, {pipeline_mode = #tpu.pipeline_mode<synchronous>, transform_indices = @transform_3, window_bounds = array<i64: 8, 72>}, {pipeline_mode = #tpu.pipeline_mode<synchronous>, transform_indices = @transform_4, window_bounds = array<i64: 8, 1>}, {transform_indices = @transform_5, window_bounds = array<i64: 1, 8, 256>}]} {
    %0 = tpu.iota {dimensions = array<i32: 1>} : vector<1x256xi32>
    %c15_i32 = arith.constant 15 : i32
    %1 = vector.broadcast %c15_i32 : i32 to vector<1x256xi32>
    %2 = arith.andi %0, %1 : vector<1x256xi32>
    %c0_i32 = arith.constant 0 : i32
    %3 = vector.broadcast %c0_i32 : i32 to vector<1x256xi32>
    %4 = arith.cmpi ne, %2, %3 : vector<1x256xi32>
    %5 = arith.extui %4 : vector<1x256xi1> to vector<1x256xi32>
    %6 = arith.sitofp %5 : vector<1x256xi32> to vector<1x256xf32>
    %c15_i32_0 = arith.constant 15 : i32
    %7 = vector.broadcast %c15_i32_0 : i32 to vector<1x256xi32>
    %8 = arith.cmpi ne, %2, %7 : vector<1x256xi32>
    %9 = arith.extui %8 : vector<1x256xi1> to vector<1x256xi32>
    %10 = arith.sitofp %9 : vector<1x256xi32> to vector<1x256xf32>
    %c0 = arith.constant 0 : index
    %c0_1 = arith.constant 0 : index
    %c0_2 = arith.constant 0 : index
    %11 = vector.load %arg1[%c0, %c0_1, %c0_2] : memref<1x8x256xf32, #tpu.memory_space<vmem>>, vector<1x8x256xf32>
    %12 = vector.shape_cast %11 : vector<1x8x256xf32> to vector<8x256xf32>
    %cst = arith.constant 0.000000e+00 : f32
    %13 = vector.broadcast %cst : f32 to vector<8x128xf32>
    %c0_3 = arith.constant 0 : index
    %c0_4 = arith.constant 0 : index
    %14 = vector.load %arg7[%c0_3, %c0_4] : memref<8x401xf32, #tpu.memory_space<vmem>>, vector<8x128xf32>
    tpu.vector_store %arg7[%c0_3, %c0_4], %13 {strides = array<i32>} : memref<8x401xf32, #tpu.memory_space<vmem>>, vector<8x128xf32>,
    %cst_5 = arith.constant 0.000000e+00 : f32
    %15 = vector.broadcast %cst_5 : f32 to vector<8x17xf32>
    %c0_6 = arith.constant 0 : index
    %c384 = arith.constant 384 : index
    %16 = vector.load %arg7[%c0_6, %c384] : memref<8x401xf32, #tpu.memory_space<vmem>>, vector<8x17xf32>
    tpu.vector_store %arg7[%c0_6, %c384], %15 {strides = array<i32>} : memref<8x401xf32, #tpu.memory_space<vmem>>, vector<8x17xf32>,
    %c0_7 = arith.constant 0 : index
    %c128 = arith.constant 128 : index
    %17 = vector.load %arg7[%c0_7, %c128] : memref<8x401xf32, #tpu.memory_space<vmem>>, vector<8x256xf32>
    tpu.vector_store %arg7[%c0_7, %c128], %12 {strides = array<i32>} : memref<8x401xf32, #tpu.memory_space<vmem>>, vector<8x256xf32>,
    %c0_8 = arith.constant 0 : index
    %c111 = arith.constant 111 : index
    %18 = vector.load %arg7[%c0_8, %c111] : memref<8x401xf32, #tpu.memory_space<vmem>>, vector<8x256xf32>
    %c0_9 = arith.constant 0 : index
    %c127 = arith.constant 127 : index
    %19 = vector.load %arg7[%c0_9, %c127] : memref<8x401xf32, #tpu.memory_space<vmem>>, vector<8x256xf32>
    %c0_10 = arith.constant 0 : index
    %c143 = arith.constant 143 : index
    %20 = vector.load %arg7[%c0_10, %c143] : memref<8x401xf32, #tpu.memory_space<vmem>>, vector<8x256xf32>
    %21 = tpu.concatenate %18, %19, %20 in 0 : vector<8x256xf32>, vector<8x256xf32>, vector<8x256xf32> -> vector<24x256xf32>
    %22 = vector.broadcast %6 : vector<1x256xf32> to vector<24x256xf32>
    %23 = arith.mulf %21, %22 : vector<24x256xf32>
    %c0_11 = arith.constant 0 : index
    %c112 = arith.constant 112 : index
    %24 = vector.load %arg7[%c0_11, %c112] : memref<8x401xf32, #tpu.memory_space<vmem>>, vector<8x256xf32>
    %c0_12 = arith.constant 0 : index
    %c128_13 = arith.constant 128 : index
    %25 = vector.load %arg7[%c0_12, %c128_13] : memref<8x401xf32, #tpu.memory_space<vmem>>, vector<8x256xf32>
    %c0_14 = arith.constant 0 : index
    %c144 = arith.constant 144 : index
    %26 = vector.load %arg7[%c0_14, %c144] : memref<8x401xf32, #tpu.memory_space<vmem>>, vector<8x256xf32>
    %27 = tpu.concatenate %24, %25, %26 in 0 : vector<8x256xf32>, vector<8x256xf32>, vector<8x256xf32> -> vector<24x256xf32>
    %c0_15 = arith.constant 0 : index
    %c113 = arith.constant 113 : index
    %28 = vector.load %arg7[%c0_15, %c113] : memref<8x401xf32, #tpu.memory_space<vmem>>, vector<8x256xf32>
    %c0_16 = arith.constant 0 : index
    %c129 = arith.constant 129 : index
    %29 = vector.load %arg7[%c0_16, %c129] : memref<8x401xf32, #tpu.memory_space<vmem>>, vector<8x256xf32>
    %c0_17 = arith.constant 0 : index
    %c145 = arith.constant 145 : index
    %30 = vector.load %arg7[%c0_17, %c145] : memref<8x401xf32, #tpu.memory_space<vmem>>, vector<8x256xf32>
    %31 = tpu.concatenate %28, %29, %30 in 0 : vector<8x256xf32>, vector<8x256xf32>, vector<8x256xf32> -> vector<24x256xf32>
    %32 = vector.broadcast %10 : vector<1x256xf32> to vector<24x256xf32>
    %33 = arith.mulf %31, %32 : vector<24x256xf32>
    %34 = tpu.concatenate %23, %27, %33 in 0 : vector<24x256xf32>, vector<24x256xf32>, vector<24x256xf32> -> vector<72x256xf32>
    %c0_18 = arith.constant 0 : index
    %c0_19 = arith.constant 0 : index
    %35 = vector.load %arg2[%c0_18, %c0_19] : memref<8x72xf32, #tpu.memory_space<vmem>>, vector<8x72xf32>
    %cst_20 = arith.constant dense<0.000000e+00> : vector<8x256xf32>
    %36 = tpu.matmul %35, %34, %cst_20 {dimension_numbers = #tpu.dot_dimension_numbers<[1], [0], [0], [1], [0, 0, 1, 1], [], []>} : vector<8x72xf32>, vector<72x256xf32>, vector<8x256xf32> -> vector<8x256xf32>
    %c0_21 = arith.constant 0 : index
    %c0_22 = arith.constant 0 : index
    %37 = vector.load %arg3[%c0_21, %c0_22] : memref<8x1xf32, #tpu.memory_space<vmem>>, vector<8x1xf32>
    %38 = vector.broadcast %37 : vector<8x1xf32> to vector<8x256xf32>
    %39 = arith.addf %36, %38 : vector<8x256xf32>
    %cst_23 = arith.constant 0.000000e+00 : f32
    %40 = vector.broadcast %cst_23 : f32 to vector<8x256xf32>
    %41 = arith.maximumf %39, %40 : vector<8x256xf32>
    %cst_24 = arith.constant 0.000000e+00 : f32
    %42 = vector.broadcast %cst_24 : f32 to vector<8x128xf32>
    %c0_25 = arith.constant 0 : index
    %c0_26 = arith.constant 0 : index
    %43 = vector.load %arg8[%c0_25, %c0_26] : memref<8x401xf32, #tpu.memory_space<vmem>>, vector<8x128xf32>
    tpu.vector_store %arg8[%c0_25, %c0_26], %42 {strides = array<i32>} : memref<8x401xf32, #tpu.memory_space<vmem>>, vector<8x128xf32>,
    %cst_27 = arith.constant 0.000000e+00 : f32
    %44 = vector.broadcast %cst_27 : f32 to vector<8x17xf32>
    %c0_28 = arith.constant 0 : index
    %c384_29 = arith.constant 384 : index
    %45 = vector.load %arg8[%c0_28, %c384_29] : memref<8x401xf32, #tpu.memory_space<vmem>>, vector<8x17xf32>
    tpu.vector_store %arg8[%c0_28, %c384_29], %44 {strides = array<i32>} : memref<8x401xf32, #tpu.memory_space<vmem>>, vector<8x17xf32>,
    %c0_30 = arith.constant 0 : index
    %c128_31 = arith.constant 128 : index
    %46 = vector.load %arg8[%c0_30, %c128_31] : memref<8x401xf32, #tpu.memory_space<vmem>>, vector<8x256xf32>
    tpu.vector_store %arg8[%c0_30, %c128_31], %41 {strides = array<i32>} : memref<8x401xf32, #tpu.memory_space<vmem>>, vector<8x256xf32>,
    %c0_32 = arith.constant 0 : index
    %c111_33 = arith.constant 111 : index
    %47 = vector.load %arg8[%c0_32, %c111_33] : memref<8x401xf32, #tpu.memory_space<vmem>>, vector<8x256xf32>
    %c0_34 = arith.constant 0 : index
    %c127_35 = arith.constant 127 : index
    %48 = vector.load %arg8[%c0_34, %c127_35] : memref<8x401xf32, #tpu.memory_space<vmem>>, vector<8x256xf32>
    %c0_36 = arith.constant 0 : index
    %c143_37 = arith.constant 143 : index
    %49 = vector.load %arg8[%c0_36, %c143_37] : memref<8x401xf32, #tpu.memory_space<vmem>>, vector<8x256xf32>
    %50 = tpu.concatenate %47, %48, %49 in 0 : vector<8x256xf32>, vector<8x256xf32>, vector<8x256xf32> -> vector<24x256xf32>
    %51 = vector.broadcast %6 : vector<1x256xf32> to vector<24x256xf32>
    %52 = arith.mulf %50, %51 : vector<24x256xf32>
    %c0_38 = arith.constant 0 : index
    %c112_39 = arith.constant 112 : index
    %53 = vector.load %arg8[%c0_38, %c112_39] : memref<8x401xf32, #tpu.memory_space<vmem>>, vector<8x256xf32>
    %c0_40 = arith.constant 0 : index
    %c128_41 = arith.constant 128 : index
    %54 = vector.load %arg8[%c0_40, %c128_41] : memref<8x401xf32, #tpu.memory_space<vmem>>, vector<8x256xf32>
    %c0_42 = arith.constant 0 : index
    %c144_43 = arith.constant 144 : index
    %55 = vector.load %arg8[%c0_42, %c144_43] : memref<8x401xf32, #tpu.memory_space<vmem>>, vector<8x256xf32>
    %56 = tpu.concatenate %53, %54, %55 in 0 : vector<8x256xf32>, vector<8x256xf32>, vector<8x256xf32> -> vector<24x256xf32>
    %c0_44 = arith.constant 0 : index
    %c113_45 = arith.constant 113 : index
    %57 = vector.load %arg8[%c0_44, %c113_45] : memref<8x401xf32, #tpu.memory_space<vmem>>, vector<8x256xf32>
    %c0_46 = arith.constant 0 : index
    %c129_47 = arith.constant 129 : index
    %58 = vector.load %arg8[%c0_46, %c129_47] : memref<8x401xf32, #tpu.memory_space<vmem>>, vector<8x256xf32>
    %c0_48 = arith.constant 0 : index
    %c145_49 = arith.constant 145 : index
    %59 = vector.load %arg8[%c0_48, %c145_49] : memref<8x401xf32, #tpu.memory_space<vmem>>, vector<8x256xf32>
    %60 = tpu.concatenate %57, %58, %59 in 0 : vector<8x256xf32>, vector<8x256xf32>, vector<8x256xf32> -> vector<24x256xf32>
    %61 = vector.broadcast %10 : vector<1x256xf32> to vector<24x256xf32>
    %62 = arith.mulf %60, %61 : vector<24x256xf32>
    %63 = tpu.concatenate %52, %56, %62 in 0 : vector<24x256xf32>, vector<24x256xf32>, vector<24x256xf32> -> vector<72x256xf32>
    %c0_50 = arith.constant 0 : index
    %c0_51 = arith.constant 0 : index
    %64 = vector.load %arg4[%c0_50, %c0_51] : memref<8x72xf32, #tpu.memory_space<vmem>>, vector<8x72xf32>
    %cst_52 = arith.constant dense<0.000000e+00> : vector<8x256xf32>
    %65 = tpu.matmul %64, %63, %cst_52 {dimension_numbers = #tpu.dot_dimension_numbers<[1], [0], [0], [1], [0, 0, 1, 1], [], []>} : vector<8x72xf32>, vector<72x256xf32>, vector<8x256xf32> -> vector<8x256xf32>
    %c0_53 = arith.constant 0 : index
    %c0_54 = arith.constant 0 : index
    %66 = vector.load %arg5[%c0_53, %c0_54] : memref<8x1xf32, #tpu.memory_space<vmem>>, vector<8x1xf32>
    %67 = vector.broadcast %66 : vector<8x1xf32> to vector<8x256xf32>
    %68 = arith.addf %65, %67 : vector<8x256xf32>
    %cst_55 = arith.constant 0.000000e+00 : f32
    %69 = vector.broadcast %cst_55 : f32 to vector<8x256xf32>
    %70 = arith.maximumf %68, %69 : vector<8x256xf32>
    %c0_56 = arith.constant 0 : index
    %c0_57 = arith.constant 0 : index
    %c0_58 = arith.constant 0 : index
    %71 = vector.load %arg6[%c0_56, %c0_57, %c0_58] : memref<1x8x256xf32, #tpu.memory_space<vmem>>, vector<1x8x256xf32>
    %72 = vector.shape_cast %71 : vector<1x8x256xf32> to vector<8x256xf32>
    %73 = vector.shape_cast %70 : vector<8x256xf32> to vector<1x8x256xf32>
    tpu.vector_store %arg6[%c0_56, %c0_57, %c0_58], %73 {strides = array<i32>} : memref<1x8x256xf32, #tpu.memory_space<vmem>>, vector<1x8x256xf32>,
    return
  }
  func.func @transform_0(%arg0: i32) -> (i32, i32, i32) {
    %c0_i32 = arith.constant 0 : i32
    %c0_i32_0 = arith.constant 0 : i32
    %c0_i32_1 = arith.constant 0 : i32
    return %arg0, %c0_i32, %c0_i32_0 : i32, i32, i32
  }
  func.func @transform_1(%arg0: i32) -> (i32, i32) {
    %c0_i32 = arith.constant 0 : i32
    %c0_i32_0 = arith.constant 0 : i32
    %c0_i32_1 = arith.constant 0 : i32
    return %c0_i32, %c0_i32_0 : i32, i32
  }
  func.func @transform_2(%arg0: i32) -> (i32, i32) {
    %c0_i32 = arith.constant 0 : i32
    %c0_i32_0 = arith.constant 0 : i32
    %c0_i32_1 = arith.constant 0 : i32
    return %c0_i32, %c0_i32_0 : i32, i32
  }
  func.func @transform_3(%arg0: i32) -> (i32, i32) {
    %c0_i32 = arith.constant 0 : i32
    %c0_i32_0 = arith.constant 0 : i32
    %c0_i32_1 = arith.constant 0 : i32
    return %c0_i32, %c0_i32_0 : i32, i32
  }
  func.func @transform_4(%arg0: i32) -> (i32, i32) {
    %c0_i32 = arith.constant 0 : i32
    %c0_i32_0 = arith.constant 0 : i32
    %c0_i32_1 = arith.constant 0 : i32
    return %c0_i32, %c0_i32_0 : i32, i32
  }
  func.func @transform_5(%arg0: i32) -> (i32, i32, i32) {
    %c0_i32 = arith.constant 0 : i32
    %c0_i32_0 = arith.constant 0 : i32
    %c0_i32_1 = arith.constant 0 : i32
    return %arg0, %c0_i32, %c0_i32_0 : i32, i32, i32
  }
}

</mosaic_0001>

<llo_original>
// kernel: tpu_custom_call.1
$region0: #{tpu_custom_call.1}
  #allocation0 [shape = 'u32[]', space=smem, size = 0x4, offset = 0x4, fixed_abs, tag = 'smem constant byte address 0x4 - core index']
  #allocation1 [shape = 'u32[144,128]{1,0:T(1,128)}', space=vmem, size = 0x12000, scoped, tag = 'internal scratch']
  #allocation2 [shape = 'f32[8,401]{1,0:T(8,128)}', space=vmem, size = 0x4000, scoped, tag = 'scratch operand']
  #allocation3 [shape = 'f32[8,401]{1,0:T(8,128)}', space=vmem, size = 0x4000, scoped, tag = 'scratch operand']
  %s0 = inlined_call_operand.hbm [shape: f32[2,8,256], index: 0, kind: input, shape index: {}]
  %s1 = inlined_call_operand.vmem [shape: f32[8,72], index: 1, kind: input, shape index: {}]
  %s2 = inlined_call_operand.vmem [shape: f32[8,1], index: 2, kind: input, shape index: {}]
  %s3 = inlined_call_operand.vmem [shape: f32[8,72], index: 3, kind: input, shape index: {}]
  %s4 = inlined_call_operand.vmem [shape: f32[8,1], index: 4, kind: input, shape index: {}]
  %s5 = inlined_call_operand.hbm [shape: f32[2,8,256], index: 5, kind: output, shape index: {}]
  %s6 = sld [smem:[#allocation0]]
  $region57: #{tpu_custom_call.1} parent=0
    _
  %s8 = ssub.s32 1, %s6
  %s9 = scalar_select 0, %s8, %s6
  $region1: #{tpu_custom_call.1} parent=0
    #allocation4 [shape = 'u8[16384]{0}', space=vmem, size = 0x4000, scoped, tag = 'input window, operand 0']
    #allocation5 [shape = 's32[2]{0}', space=sflag, size = 0x8, scoped, tag = 'scoped memory for tpu_custom_call.1']
    #allocation6 [shape = 's32[2]{0}', space=sflag, size = 0x8, scoped, tag = 'scoped memory for tpu_custom_call.1']
    #allocation7 [shape = 'u8[16384]{0}', space=vmem, size = 0x4000, scoped, tag = 'output window, operand 0']
    %10 = vsyncpa [#allocation5], 0
    %s11 = scalar_lea.sflag [#allocation5], 1
    %12 = vsyncpa %s11, 0
    %13 = vsyncpa [#allocation6], 0
    %s14 = scalar_lea.sflag [#allocation6], 1
    %15 = vsyncpa %s14, 0
    loop: start=0, step=1, limit=4
    $region2: #{tpu_custom_call.1} parent=1 // loop_pre_header
      _
    $region3: #{tpu_custom_call.1} parent=1 // loop_header
      %s17 = sphi 0, %s21
      %p18 = scmp.ge.s32.totalorder %s17, 4
      %s27 = sphi 0, %s29
      %s30 = sphi 0, %s27
      %s31 = sphi 0, %s30
      %s47 = sphi 0, %s31
      %s51 = sphi 0, %s51
      %s53 = sphi 0, %s51
      %s54 = sphi 0, %s53
      %s68 = sphi 0, %s54
      %s72 = sphi 0, %s72
      %s74 = sphi 0, %s72
      %s75 = sphi 0, %s74
      %s89 = sphi 0, %s75
      %s93 = sphi 0, %s93
      %s95 = sphi 0, %s93
      %s96 = sphi 0, %s95
      %s110 = sphi 0, %s96
      %s114 = sphi 0, %s114
      %s116 = sphi 0, %s114
      %s117 = sphi 0, %s116
      %s131 = sphi 0, %s117
      %s137 = sphi 0, %s139
      %s140 = sphi 0, %s137
      %s141 = sphi 0, %s140
      %s157 = sphi 0, %s141
    $region4: #{tpu_custom_call.1} parent=1 // loop_header_branch
      %20 = sbr.rel (%p18) target = $region8
    $region5: #{tpu_custom_call.1} parent=1 // loop_body
      %s22 = ssub.s32 %s17, 1
      %s23 = ssub.s32 %s17, 2
      %s24 = sadd.s32 %s17, 1
      %s25 = ssub.s32 %s17, %s24
      %p26 = scmp.eq.s32.totalorder %s25, 0
      %s28 = sadd.s32 %s27, 1
      %s29 = scalar_select %p26, %s27, %s28
      %p32 = pneg %p26
      %p33 = scmp.eq.s32.totalorder %s17, 1
      %p34 = por %p32, %p33
      %p35 = scmp.ne.s32.totalorder %s27, %s30
      %p36 = scmp.eq.s32.totalorder %s17, 0
      %p37 = por %p35, %p36
      %p38 = scmp.ne.s32.totalorder %s27, %s30
      %p39 = scmp.eq.s32.totalorder %s22, 1
      %p40 = por %p38, %p39
      %p41 = scmp.ne.s32.totalorder %s30, %s31
      %p42 = scmp.eq.s32.totalorder %s22, 0
      %p43 = por %p41, %p42
      %p44 = scmp.ne.s32.totalorder %s30, %s31
      %p45 = scmp.eq.s32.totalorder %s23, 1
      %p46 = por %p44, %p45
      %p48 = scmp.ne.s32.totalorder %s31, %s47
      %p49 = scmp.eq.s32.totalorder %s23, 0
      %p50 = por %p48, %p49
      %s52 = sadd.s32 %s51, 1
      %p55 = scmp.eq.s32.totalorder %s17, 1
      %p56 = scmp.ne.s32.totalorder %s51, %s53
      %p57 = scmp.eq.s32.totalorder %s17, 0
      %p58 = por %p56, %p57
      %p59 = scmp.ne.s32.totalorder %s51, %s53
      %p60 = scmp.eq.s32.totalorder %s22, 1
      %p61 = por %p59, %p60
      %p62 = scmp.ne.s32.totalorder %s53, %s54
      %p63 = scmp.eq.s32.totalorder %s22, 0
      %p64 = por %p62, %p63
      %p65 = scmp.ne.s32.totalorder %s53, %s54
      %p66 = scmp.eq.s32.totalorder %s23, 1
      %p67 = por %p65, %p66
      %p69 = scmp.ne.s32.totalorder %s54, %s68
      %p70 = scmp.eq.s32.totalorder %s23, 0
      %p71 = por %p69, %p70
      %s73 = sadd.s32 %s72, 1
      %p76 = scmp.eq.s32.totalorder %s17, 1
      %p77 = scmp.ne.s32.totalorder %s72, %s74
      %p78 = scmp.eq.s32.totalorder %s17, 0
      %p79 = por %p77, %p78
      %p80 = scmp.ne.s32.totalorder %s72, %s74
      %p81 = scmp.eq.s32.totalorder %s22, 1
      %p82 = por %p80, %p81
      %p83 = scmp.ne.s32.totalorder %s74, %s75
      %p84 = scmp.eq.s32.totalorder %s22, 0
      %p85 = por %p83, %p84
      %p86 = scmp.ne.s32.totalorder %s74, %s75
      %p87 = scmp.eq.s32.totalorder %s23, 1
      %p88 = por %p86, %p87
      %p90 = scmp.ne.s32.totalorder %s75, %s89
      %p91 = scmp.eq.s32.totalorder %s23, 0
      %p92 = por %p90, %p91
      %s94 = sadd.s32 %s93, 1
      %p97 = scmp.eq.s32.totalorder %s17, 1
      %p98 = scmp.ne.s32.totalorder %s93, %s95
      %p99 = scmp.eq.s32.totalorder %s17, 0
      %p100 = por %p98, %p99
      %p101 = scmp.ne.s32.totalorder %s93, %s95
      %p102 = scmp.eq.s32.totalorder %s22, 1
      %p103 = por %p101, %p102
      %p104 = scmp.ne.s32.totalorder %s95, %s96
      %p105 = scmp.eq.s32.totalorder %s22, 0
      %p106 = por %p104, %p105
      %p107 = scmp.ne.s32.totalorder %s95, %s96
      %p108 = scmp.eq.s32.totalorder %s23, 1
      %p109 = por %p107, %p108
      %p111 = scmp.ne.s32.totalorder %s96, %s110
      %p112 = scmp.eq.s32.totalorder %s23, 0
      %p113 = por %p111, %p112
      %s115 = sadd.s32 %s114, 1
      %p118 = scmp.eq.s32.totalorder %s17, 1
      %p119 = scmp.ne.s32.totalorder %s114, %s116
      %p120 = scmp.eq.s32.totalorder %s17, 0
      %p121 = por %p119, %p120
      %p122 = scmp.ne.s32.totalorder %s114, %s116
      %p123 = scmp.eq.s32.totalorder %s22, 1
      %p124 = por %p122, %p123
      %p125 = scmp.ne.s32.totalorder %s116, %s117
      %p126 = scmp.eq.s32.totalorder %s22, 0
      %p127 = por %p125, %p126
      %p128 = scmp.ne.s32.totalorder %s116, %s117
      %p129 = scmp.eq.s32.totalorder %s23, 1
      %p130 = por %p128, %p129
      %p132 = scmp.ne.s32.totalorder %s117, %s131
      %p133 = scmp.eq.s32.totalorder %s23, 0
      %p134 = por %p132, %p133
      %s135 = ssub.s32 %s17, %s24
      %p136 = scmp.eq.s32.totalorder %s135, 0
      %s138 = sadd.s32 %s137, 1
      %s139 = scalar_select %p136, %s137, %s138
      %p142 = pneg %p136
      %p143 = scmp.eq.s32.totalorder %s17, 1
      %p144 = por %p142, %p143
      %p145 = scmp.ne.s32.totalorder %s137, %s140
      %p146 = scmp.eq.s32.totalorder %s17, 0
      %p147 = por %p145, %p146
      %p148 = scmp.ne.s32.totalorder %s137, %s140
      %p149 = scmp.eq.s32.totalorder %s22, 1
      %p150 = por %p148, %p149
      %p151 = scmp.ne.s32.totalorder %s140, %s141
      %p152 = scmp.eq.s32.totalorder %s22, 0
      %p153 = por %p151, %p152
      %p154 = scmp.ne.s32.totalorder %s140, %s141
      %p155 = scmp.eq.s32.totalorder %s23, 1
      %p156 = por %p154, %p155
      %p158 = scmp.ne.s32.totalorder %s141, %s157
      %p159 = scmp.eq.s32.totalorder %s23, 0
      %p160 = por %p158, %p159
      %p161 = scmp.le.s32.totalorder 1, %s17
      %p162 = scmp.lt.s32.totalorder %s17, 3
      %p163 = pnand %p161, %p162
      %p164 = pneg %p163
      // Predicated region
      $region9: #{tpu_custom_call.1} parent=5 // pred_check
        _
      $region10: #{tpu_custom_call.1} parent=5 // pred_check_branch
        %166 = sbr.rel (%p163) target = $region12
      $region11: #{tpu_custom_call.1} parent=5 // pred_region
        %s167 = ssub.s32 %s17, 1
        // Predicated region
        $region13: #{tpu_custom_call.1} parent=11 // pred_check
          %p168 = pneg %p64
        $region14: #{tpu_custom_call.1} parent=11 // pred_check_branch
          %170 = sbr.rel (%p168) target = $region16
        $region15: #{tpu_custom_call.1} parent=11 // pred_region
          _
        $region16: #{tpu_custom_call.1} parent=11 // pred_fallthru
          _
        // Predicated region
        $region17: #{tpu_custom_call.1} parent=11 // pred_check
          %p171 = pneg %p85
        $region18: #{tpu_custom_call.1} parent=11 // pred_check_branch
          %173 = sbr.rel (%p171) target = $region20
        $region19: #{tpu_custom_call.1} parent=11 // pred_region
          _
        $region20: #{tpu_custom_call.1} parent=11 // pred_fallthru
          _
        // Predicated region
        $region21: #{tpu_custom_call.1} parent=11 // pred_check
          %p174 = pneg %p106
        $region22: #{tpu_custom_call.1} parent=11 // pred_check_branch
          %176 = sbr.rel (%p174) target = $region24
        $region23: #{tpu_custom_call.1} parent=11 // pred_region
          _
        $region24: #{tpu_custom_call.1} parent=11 // pred_fallthru
          _
        // Predicated region
        $region25: #{tpu_custom_call.1} parent=11 // pred_check
          %p177 = pneg %p127
        $region26: #{tpu_custom_call.1} parent=11 // pred_check_branch
          %179 = sbr.rel (%p177) target = $region28
        $region27: #{tpu_custom_call.1} parent=11 // pred_region
          _
        $region28: #{tpu_custom_call.1} parent=11 // pred_fallthru
          _
      $region12: #{tpu_custom_call.1} parent=5 // pred_fallthru
        _
      %p180 = scmp.lt.s32.totalorder %s17, 2
      // Predicated region
      $region29: #{tpu_custom_call.1} parent=5 // pred_check
        %p181 = pneg %p180
      $region30: #{tpu_custom_call.1} parent=5 // pred_check_branch
        %183 = sbr.rel (%p181) target = $region32
      $region31: #{tpu_custom_call.1} parent=5 // pred_region
        // Predicated region
        $region33: #{tpu_custom_call.1} parent=31 // pred_check
          %p184 = pneg %p37
        $region34: #{tpu_custom_call.1} parent=31 // pred_check_branch
          %186 = sbr.rel (%p184) target = $region36
        $region35: #{tpu_custom_call.1} parent=31 // pred_region
          %s187 = sand.u32 %s27, 1
          %s188 = scalar_lea.sflag [#allocation5], %s187
          %s189 = sand.u32 %s27, 1
          %s190 = smul.addr %s189, 16
          %s191 = scalar_lea.vmem [#allocation4], %s190
          %s193 = ssub.s32 256, 256
          %194 = vsyncadd %s188, %s193
          %s195 = smul.addr %s17, 2
          %s196 = smul.addr %s195, 128
          %s197 = scalar_lea.hbm %s0, %s196
          %s199 = sshll.u32 %s191, 4
          %s200 = int_to_ptr.vmem [resolvable:$true] %s199
          %202 = dma.hbm_to_vmem [thread:$0]  %s197, 256, %s200, %s188
        $region36: #{tpu_custom_call.1} parent=31 // pred_fallthru
          _
      $region32: #{tpu_custom_call.1} parent=5 // pred_fallthru
        _
      %p203 = scmp.le.s32.totalorder 1, %s17
      %p204 = scmp.lt.s32.totalorder %s17, 3
      %p205 = pnand %p203, %p204
      %p206 = pneg %p205
      // Predicated region
      $region37: #{tpu_custom_call.1} parent=5 // pred_check
        _
      $region38: #{tpu_custom_call.1} parent=5 // pred_check_branch
        %208 = sbr.rel (%p205) target = $region40
      $region39: #{tpu_custom_call.1} parent=5 // pred_region
        %s209 = ssub.s32 %s17, 1
        %s210 = sand.u32 %s30, 1
        %s211 = scalar_lea.sflag [#allocation5], %s210
        %s212 = sand.u32 %s30, 1
        %s213 = smul.addr %s212, 16
        %s214 = scalar_lea.vmem [#allocation4], %s213
        // Predicated region
        $region41: #{tpu_custom_call.1} parent=39 // pred_check
          %p215 = pneg %p43
        $region42: #{tpu_custom_call.1} parent=39 // pred_check_branch
          %217 = sbr.rel (%p215) target = $region44
        $region43: #{tpu_custom_call.1} parent=39 // pred_region
          %218 = dma.done %s211, 256
        $region44: #{tpu_custom_call.1} parent=39 // pred_fallthru
          _
        %s219 = sand.u32 %s30, 1
        %s220 = scalar_lea.sflag [#allocation5], %s219
        %s221 = sand.u32 %s30, 1
        %s222 = smul.addr %s221, 16
        %s223 = scalar_lea.vmem [#allocation4], %s222
        %p224 = pneg %p43
        %p225 = pneg %p40
        %p226 = pneg %p64
        %p227 = pneg %p61
        %p228 = pneg %p85
        %p229 = pneg %p82
        %p230 = pneg %p106
        %p231 = pneg %p103
        %p232 = pneg %p127
        %p233 = pneg %p124
        %p234 = pneg %p153
        %p235 = pneg %p150
        %s236 = sand.u32 %s140, 1
        %s237 = scalar_lea.sflag [#allocation6], %s236
        %s238 = sand.u32 %s140, 1
        %s239 = smul.addr %s238, 16
        %s240 = scalar_lea.vmem [#allocation7], %s239
        %v241 = vlaneseq
        %v242 = vand.u32 %v241, 127
        %v243 = vadd.s32 %v242, 128
        %v244 = vand.u32 %v242, 15
        %v245 = vand.u32 %v243, 15
        %vm246 = vcmp.ne.s32.totalorder %v244, 0
        %vm247 = vcmp.ne.s32.totalorder %v245, 0
        %v248 = vsel %vm246, 1, 0
        %v249 = vsel %vm247, 1, 0
        %v250 = vcvt.s32.f32 %v248
        %v251 = vcvt.s32.f32 %v249
        %vm252 = vcmp.ne.s32.totalorder %v244, 15
        %vm253 = vcmp.ne.s32.totalorder %v245, 15
        %v254 = vsel %vm252, 1, 0
        %v255 = vsel %vm253, 1, 0
        %v256 = vcvt.s32.f32 %v254
        %v257 = vcvt.s32.f32 %v255
        %v258 = vld [vmem:[%s214] sm:$0xff]
        %v259 = vld [vmem:[%s214 + $0x8] sm:$0xff]
        %260 = vst [vmem:[#allocation2] sm:$0xff] 0.0
        %vm261 = vcmask 138240
        %262 = vst.msk [vmem:[#allocation2 + $0x18] sm:$0xff] %vm261, 0.0
        %263 = vst [vmem:[#allocation2 + $0x8] sm:$0xff] %v258
        %264 = vst [vmem:[#allocation2 + $0x10] sm:$0xff] %v259
        %v265 = vld [vmem:[#allocation2] sm:$0xff]
        %v266 = vld [vmem:[#allocation2 + $0x8] sm:$0xff]
        %v267 = vld [vmem:[#allocation2 + $0x10] sm:$0xff]
        %v268 = vld [vmem:[#allocation2 + $0x18] sm:$0xff]
        %272 = vrot.lane.b32.xlu0 %v265, 112
        %v273 = vpop.permute.xlu0 %272
        %274 = vrot.lane.b32.xlu0 %v266, 112
        %v275 = vpop.permute.xlu0 %274
        %276 = vrot.lane.b32.xlu0 %v267, 112
        %v277 = vpop.permute.xlu0 %276
        %vm278 = vcmask 916480
        %v279 = vsel %vm278, %v273, %v275
        %v280 = vsel %vm278, %v275, %v277
        %285 = vrot.lane.b32.xlu0 %v266, 96
        %v286 = vpop.permute.xlu0 %285
        %287 = vrot.lane.b32.xlu0 %v267, 96
        %v288 = vpop.permute.xlu0 %287
        %289 = vrot.lane.b32.xlu0 %v268, 96
        %v290 = vpop.permute.xlu0 %289
        %vm291 = vcmask 785408
        %v292 = vsel %vm291, %v286, %v288
        %v293 = vsel %vm291, %v288, %v290
        %299 = vrot.lane.b32.xlu0 %v250, 111
        %v300 = vpop.permute.xlu0 %299
        %301 = vrot.lane.b32.xlu0 %v251, 111
        %v302 = vpop.permute.xlu0 %301
        %vm303 = vcmask 908288
        %v304 = vsel %vm303, %v300, %v302
        %v308 = vmul.f32 %v265, %v300
        %v309 = vmul.f32 %v266, %v304
        %v310 = vmul.f32 %v267, %v302
        %v311 = vmul.f32 %v279, %v300
        %v312 = vmul.f32 %v280, %v304
        %v313 = vmul.f32 %v277, %v302
        %v314 = vmul.f32 %v286, %v300
        %v315 = vmul.f32 %v292, %v304
        %v316 = vmul.f32 %v293, %v302
        %317 = vrot.lane.b32.xlu0 %v268, 112
        %v318 = vpop.permute.xlu0 %317
        %v319 = vsel %vm278, %v277, %v318
        %324 = vrot.lane.b32.xlu0 %v256, 113
        %v325 = vpop.permute.xlu0 %324
        %326 = vrot.lane.b32.xlu0 %v257, 113
        %v327 = vpop.permute.xlu0 %326
        %vm328 = vcmask 924672
        %v329 = vsel %vm328, %v325, %v327
        %v333 = vmul.f32 %v265, %v325
        %v334 = vmul.f32 %v266, %v329
        %v335 = vmul.f32 %v267, %v327
        %v336 = vmul.f32 %v275, %v325
        %v337 = vmul.f32 %v280, %v329
        %v338 = vmul.f32 %v319, %v327
        %v339 = vmul.f32 %v286, %v325
        %v340 = vmul.f32 %v292, %v329
        %v341 = vmul.f32 %v293, %v327
        %342 = vrot.lane.b32.xlu0 %v265, 127
        %v343 = vpop.permute.xlu0 %342
        %344 = vrot.lane.b32.xlu0 %v266, 127
        %v345 = vpop.permute.xlu0 %344
        %346 = vrot.lane.b32.xlu0 %v267, 127
        %v347 = vpop.permute.xlu0 %346
        %348 = vrot.lane.b32.xlu0 %v275, 127
        %v349 = vpop.permute.xlu0 %348
        %350 = vrot.lane.b32.xlu0 %v280, 127
        %v351 = vpop.permute.xlu0 %350
        %352 = vrot.lane.b32.xlu0 %v277, 127
        %v353 = vpop.permute.xlu0 %352
        %354 = vrot.lane.b32.xlu0 %v286, 127
        %v355 = vpop.permute.xlu0 %354
        %356 = vrot.lane.b32.xlu0 %v292, 127
        %v357 = vpop.permute.xlu0 %356
        %358 = vrot.lane.b32.xlu0 %v293, 127
        %v359 = vpop.permute.xlu0 %358
        %vm360 = vcmask 1039360
        %v361 = vsel %vm360, %v343, %v345
        %v362 = vsel %vm360, %v345, %v347
        %v363 = vsel %vm360, %v349, %v351
        %v364 = vsel %vm360, %v351, %v353
        %v365 = vsel %vm360, %v355, %v357
        %v366 = vsel %vm360, %v357, %v359
        %376 = vrot.lane.b32.xlu0 %v333, 126
        %v377 = vpop.permute.xlu0 %376
        %378 = vrot.lane.b32.xlu0 %v334, 126
        %v379 = vpop.permute.xlu0 %378
        %380 = vrot.lane.b32.xlu0 %v335, 126
        %v381 = vpop.permute.xlu0 %380
        %382 = vrot.lane.b32.xlu0 %v336, 126
        %v383 = vpop.permute.xlu0 %382
        %384 = vrot.lane.b32.xlu0 %v337, 126
        %v385 = vpop.permute.xlu0 %384
        %386 = vrot.lane.b32.xlu0 %v338, 126
        %v387 = vpop.permute.xlu0 %386
        %388 = vrot.lane.b32.xlu0 %v339, 126
        %v389 = vpop.permute.xlu0 %388
        %390 = vrot.lane.b32.xlu0 %v340, 126
        %v391 = vpop.permute.xlu0 %390
        %392 = vrot.lane.b32.xlu0 %v341, 126
        %v393 = vpop.permute.xlu0 %392
        %vm394 = vcmask 1031168
        %v395 = vsel %vm394, %v377, %v379
        %v396 = vsel %vm394, %v379, %v381
        %v397 = vsel %vm394, %v383, %v385
        %v398 = vsel %vm394, %v385, %v387
        %v399 = vsel %vm394, %v389, %v391
        %v400 = vsel %vm394, %v391, %v393
        %v401 = vld [vmem:[%s1] sm:$0xff]
        %v402 = vld [vmem:[%s2] sm:$0xff]
        %404 = vset.pattern.permute.xlu0 0
        %405 = vperm.xlu0 %404, %v402
        %v406 = vpop.permute.xlu0 %405
        %417 = vrot.lane.b32.xlu0 %v308, 17
        %v418 = vpop.permute.xlu0 %417
        %419 = vrot.lane.b32.xlu0 %v309, 17
        %v420 = vpop.permute.xlu0 %419
        %421 = vrot.lane.b32.xlu0 %v310, 17
        %v422 = vpop.permute.xlu0 %421
        %423 = vrot.lane.b32.xlu0 %v311, 17
        %v424 = vpop.permute.xlu0 %423
        %425 = vrot.lane.b32.xlu0 %v312, 17
        %v426 = vpop.permute.xlu0 %425
        %427 = vrot.lane.b32.xlu0 %v313, 17
        %v428 = vpop.permute.xlu0 %427
        %429 = vrot.lane.b32.xlu0 %v314, 17
        %v430 = vpop.permute.xlu0 %429
        %431 = vrot.lane.b32.xlu0 %v315, 17
        %v432 = vpop.permute.xlu0 %431
        %433 = vrot.lane.b32.xlu0 %v316, 17
        %v434 = vpop.permute.xlu0 %433
        %435 = vrot.lane.b32.xlu0 %v361, 17
        %v436 = vpop.permute.xlu0 %435
        %437 = vrot.lane.b32.xlu0 %v362, 17
        %v438 = vpop.permute.xlu0 %437
        %439 = vrot.lane.b32.xlu0 %v347, 17
        %v440 = vpop.permute.xlu0 %439
        %441 = vrot.lane.b32.xlu0 %v363, 17
        %v442 = vpop.permute.xlu0 %441
        %443 = vrot.lane.b32.xlu0 %v364, 17
        %v444 = vpop.permute.xlu0 %443
        %445 = vrot.lane.b32.xlu0 %v353, 17
        %v446 = vpop.permute.xlu0 %445
        %447 = vrot.lane.b32.xlu0 %v365, 17
        %v448 = vpop.permute.xlu0 %447
        %449 = vrot.lane.b32.xlu0 %v366, 17
        %v450 = vpop.permute.xlu0 %449
        %451 = vrot.lane.b32.xlu0 %v359, 17
        %v452 = vpop.permute.xlu0 %451
        %453 = vrot.lane.b32.xlu0 %v395, 17
        %v454 = vpop.permute.xlu0 %453
        %455 = vrot.lane.b32.xlu0 %v396, 17
        %v456 = vpop.permute.xlu0 %455
        %457 = vrot.lane.b32.xlu0 %v381, 17
        %v458 = vpop.permute.xlu0 %457
        %459 = vrot.lane.b32.xlu0 %v397, 17
        %v460 = vpop.permute.xlu0 %459
        %461 = vrot.lane.b32.xlu0 %v398, 17
        %v462 = vpop.permute.xlu0 %461
        %463 = vrot.lane.b32.xlu0 %v387, 17
        %v464 = vpop.permute.xlu0 %463
        %465 = vrot.lane.b32.xlu0 %v399, 17
        %v466 = vpop.permute.xlu0 %465
        %467 = vrot.lane.b32.xlu0 %v400, 17
        %v468 = vpop.permute.xlu0 %467
        %469 = vrot.lane.b32.xlu0 %v393, 17
        %v470 = vpop.permute.xlu0 %469
        %v471 = vsel %vm261, %v418, %v420
        %v472 = vsel %vm261, %v420, %v422
        %v473 = vsel %vm261, %v424, %v426
        %v474 = vsel %vm261, %v426, %v428
        %v475 = vsel %vm261, %v430, %v432
        %v476 = vsel %vm261, %v432, %v434
        %v477 = vsel %vm261, %v436, %v438
        %v478 = vsel %vm261, %v438, %v440
        %v479 = vsel %vm261, %v442, %v444
        %v480 = vsel %vm261, %v444, %v446
        %v481 = vsel %vm261, %v448, %v450
        %v482 = vsel %vm261, %v450, %v452
        %v483 = vsel %vm261, %v454, %v456
        %v484 = vsel %vm261, %v456, %v458
        %v485 = vsel %vm261, %v460, %v462
        %v486 = vsel %vm261, %v462, %v464
        %v487 = vsel %vm261, %v466, %v468
        %v488 = vsel %vm261, %v468, %v470
        %vm507 = vcmask 588800
        %v509 = vsel %vm507, %v401, 0
        %511 = vmatprep.subr.mxu0 %v472
        %512 = vmatpush1.msra.mxu0 %v471
        %513 = vmatprep.subr.mxu0 %v474
        %514 = vmatpush1.msra.mxu0 %v473
        %515 = vmatprep.subr.mxu0 %v476
        %516 = vmatpush1.msra.mxu0 %v475
        %517 = vmatprep.subr.mxu0 %v478
        %518 = vmatpush1.msra.mxu0 %v477
        %519 = vmatprep.subr.mxu0 %v480
        %520 = vmatpush1.msra.mxu0 %v479
        %521 = vmatprep.subr.mxu0 %v482
        %522 = vmatpush1.msra.mxu0 %v481
        %523 = vmatprep.subr.mxu0 %v484
        %524 = vmatpush1.msra.mxu0 %v483
        %525 = vmatprep.subr.mxu0 %v486
        %526 = vmatpush1.msra.mxu0 %v485
        %527 = vmatprep.subr.mxu0 %v488
        %528 = vmatpush1.msra.mxu0 %v487
        %529 = vmatprep.subr.mxu0 0.0
        %530 = vmatpush1.msra.mxu0 0.0
        %531 = vmatprep.subr.mxu0 0.0
        %532 = vmatpush1.msra.mxu0 0.0
        %533 = vmatprep.subr.mxu0 0.0
        %534 = vmatpush1.msra.mxu0 0.0
        %535 = vmatprep.subr.mxu0 0.0
        %536 = vmatpush1.msra.mxu0 0.0
        %537 = vmatprep.subr.mxu0 0.0
        %538 = vmatpush1.msra.mxu0 0.0
        %539 = vmatprep.subr.mxu0 0.0
        %540 = vmatpush1.msra.mxu0 0.0
        %541 = vmatprep.subr.mxu0 0.0
        %542 = vmatpush1.msra.mxu0 0.0
        %543 = vmatprep.subr.mxu0 0.0
        %544 = vmatpush1.msra.mxu0 0.0
        %545 = vmatprep.subr.mxu0 0.0
        %546 = vmatpush1.msra.mxu0 0.0
        %547 = vmatprep.subr.mxu0 0.0
        %548 = vmatpush1.msra.mxu0 0.0
        %549 = vmatprep.subr.mxu0 0.0
        %550 = vmatpush1.msra.mxu0 0.0
        %551 = vmatprep.subr.mxu0 0.0
        %552 = vmatpush1.msra.mxu0 0.0
        %553 = vmatprep.subr.mxu0 0.0
        %554 = vmatpush1.msra.mxu0 0.0
        %555 = vmatprep.subr.mxu0 0.0
        %556 = vmatpush1.msra.mxu0 0.0
        %557 = vmatprep.subr.mxu0 0.0
        %558 = vmatpush1.msra.mxu0 0.0
        %559 = vmatprep.subr.mxu0 0.0
        %560 = vmatpush1.msra.mxu0 0.0
        %561 = vmatprep.subr.mxu0 0.0
        %562 = vmatpush1.msra.mxu0 0.0
        %563 = vmatprep.subr.mxu0 0.0
        %564 = vmatpush1.msra.mxu0 0.0
        %565 = vmatprep.subr.mxu0 0.0
        %566 = vmatpush1.msra.mxu0 0.0
        %567 = vmatprep.subr.mxu0 0.0
        %568 = vmatpush1.msra.mxu0 0.0
        %569 = vmatprep.subr.mxu0 0.0
        %570 = vmatpush1.msra.mxu0 0.0
        %571 = vmatprep.subr.mxu0 0.0
        %572 = vmatpush1.msra.mxu0 0.0
        %573 = vmatprep.subr.mxu0 0.0
        %574 = vmatpush1.msra.mxu0 0.0
        %575 = vmatprep.mubr.f32.mxu0 0.0
        %576 = vmatmul.mubr.f32.gmra.mrb[0].mxu0 %v509
        %v577 = vpop.f32.mrb[0].mxu0
        %v578 = vadd.f32 %v406, %v577
        %v579 = vpop.f32.mrb[0].mxu0
        %v580 = vadd.f32 %v406, %v579
        %581 = vdwg.mxu0
        %v582 = vmax.f32 %v578, 0.0
        %v583 = vmax.f32 %v580, 0.0
        %584 = vst [vmem:[#allocation3] sm:$0xff] 0.0
        %585 = vst.msk [vmem:[#allocation3 + $0x18] sm:$0xff] %vm261, 0.0
        %586 = vst [vmem:[#allocation3 + $0x8] sm:$0xff] %v582
        %587 = vst [vmem:[#allocation3 + $0x10] sm:$0xff] %v583
        %v588 = vld [vmem:[#allocation3] sm:$0xff]
        %v589 = vld [vmem:[#allocation3 + $0x8] sm:$0xff]
        %v590 = vld [vmem:[#allocation3 + $0x10] sm:$0xff]
        %v591 = vld [vmem:[#allocation3 + $0x18] sm:$0xff]
        %595 = vrot.lane.b32.xlu0 %v588, 112
        %v596 = vpop.permute.xlu0 %595
        %597 = vrot.lane.b32.xlu0 %v589, 112
        %v598 = vpop.permute.xlu0 %597
        %599 = vrot.lane.b32.xlu0 %v590, 112
        %v600 = vpop.permute.xlu0 %599
        %v601 = vsel %vm278, %v596, %v598
        %v602 = vsel %vm278, %v598, %v600
        %607 = vrot.lane.b32.xlu0 %v589, 96
        %v608 = vpop.permute.xlu0 %607
        %609 = vrot.lane.b32.xlu0 %v590, 96
        %v610 = vpop.permute.xlu0 %609
        %611 = vrot.lane.b32.xlu0 %v591, 96
        %v612 = vpop.permute.xlu0 %611
        %v613 = vsel %vm291, %v608, %v610
        %v614 = vsel %vm291, %v610, %v612
        %v618 = vmul.f32 %v588, %v300
        %v619 = vmul.f32 %v589, %v304
        %v620 = vmul.f32 %v590, %v302
        %v621 = vmul.f32 %v601, %v300
        %v622 = vmul.f32 %v602, %v304
        %v623 = vmul.f32 %v600, %v302
        %v624 = vmul.f32 %v608, %v300
        %v625 = vmul.f32 %v613, %v304
        %v626 = vmul.f32 %v614, %v302
        %627 = vrot.lane.b32.xlu0 %v591, 112
        %v628 = vpop.permute.xlu0 %627
        %v629 = vsel %vm278, %v600, %v628
        %v632 = vmul.f32 %v588, %v325
        %v633 = vmul.f32 %v589, %v329
        %v634 = vmul.f32 %v590, %v327
        %v635 = vmul.f32 %v598, %v325
        %v636 = vmul.f32 %v602, %v329
        %v637 = vmul.f32 %v629, %v327
        %v638 = vmul.f32 %v608, %v325
        %v639 = vmul.f32 %v613, %v329
        %v640 = vmul.f32 %v614, %v327
        %641 = vrot.lane.b32.xlu0 %v588, 127
        %v642 = vpop.permute.xlu0 %641
        %643 = vrot.lane.b32.xlu0 %v589, 127
        %v644 = vpop.permute.xlu0 %643
        %645 = vrot.lane.b32.xlu0 %v590, 127
        %v646 = vpop.permute.xlu0 %645
        %647 = vrot.lane.b32.xlu0 %v598, 127
        %v648 = vpop.permute.xlu0 %647
        %649 = vrot.lane.b32.xlu0 %v602, 127
        %v650 = vpop.permute.xlu0 %649
        %651 = vrot.lane.b32.xlu0 %v600, 127
        %v652 = vpop.permute.xlu0 %651
        %653 = vrot.lane.b32.xlu0 %v608, 127
        %v654 = vpop.permute.xlu0 %653
        %655 = vrot.lane.b32.xlu0 %v613, 127
        %v656 = vpop.permute.xlu0 %655
        %657 = vrot.lane.b32.xlu0 %v614, 127
        %v658 = vpop.permute.xlu0 %657
        %v659 = vsel %vm360, %v642, %v644
        %v660 = vsel %vm360, %v644, %v646
        %v661 = vsel %vm360, %v648, %v650
        %v662 = vsel %vm360, %v650, %v652
        %v663 = vsel %vm360, %v654, %v656
        %v664 = vsel %vm360, %v656, %v658
        %674 = vrot.lane.b32.xlu0 %v632, 126
        %v675 = vpop.permute.xlu0 %674
        %676 = vrot.lane.b32.xlu0 %v633, 126
        %v677 = vpop.permute.xlu0 %676
        %678 = vrot.lane.b32.xlu0 %v634, 126
        %v679 = vpop.permute.xlu0 %678
        %680 = vrot.lane.b32.xlu0 %v635, 126
        %v681 = vpop.permute.xlu0 %680
        %682 = vrot.lane.b32.xlu0 %v636, 126
        %v683 = vpop.permute.xlu0 %682
        %684 = vrot.lane.b32.xlu0 %v637, 126
        %v685 = vpop.permute.xlu0 %684
        %686 = vrot.lane.b32.xlu0 %v638, 126
        %v687 = vpop.permute.xlu0 %686
        %688 = vrot.lane.b32.xlu0 %v639, 126
        %v689 = vpop.permute.xlu0 %688
        %690 = vrot.lane.b32.xlu0 %v640, 126
        %v691 = vpop.permute.xlu0 %690
        %v692 = vsel %vm394, %v675, %v677
        %v693 = vsel %vm394, %v677, %v679
        %v694 = vsel %vm394, %v681, %v683
        %v695 = vsel %vm394, %v683, %v685
        %v696 = vsel %vm394, %v687, %v689
        %v697 = vsel %vm394, %v689, %v691
        %v698 = vld [vmem:[%s3] sm:$0xff]
        %v699 = vld [vmem:[%s4] sm:$0xff]
        %701 = vset.pattern.permute.xlu0 0
        %702 = vperm.xlu0 %701, %v699
        %v703 = vpop.permute.xlu0 %702
        %714 = vrot.lane.b32.xlu0 %v618, 17
        %v715 = vpop.permute.xlu0 %714
        %716 = vrot.lane.b32.xlu0 %v619, 17
        %v717 = vpop.permute.xlu0 %716
        %718 = vrot.lane.b32.xlu0 %v620, 17
        %v719 = vpop.permute.xlu0 %718
        %720 = vrot.lane.b32.xlu0 %v621, 17
        %v721 = vpop.permute.xlu0 %720
        %722 = vrot.lane.b32.xlu0 %v622, 17
        %v723 = vpop.permute.xlu0 %722
        %724 = vrot.lane.b32.xlu0 %v623, 17
        %v725 = vpop.permute.xlu0 %724
        %726 = vrot.lane.b32.xlu0 %v624, 17
        %v727 = vpop.permute.xlu0 %726
        %728 = vrot.lane.b32.xlu0 %v625, 17
        %v729 = vpop.permute.xlu0 %728
        %730 = vrot.lane.b32.xlu0 %v626, 17
        %v731 = vpop.permute.xlu0 %730
        %732 = vrot.lane.b32.xlu0 %v659, 17
        %v733 = vpop.permute.xlu0 %732
        %734 = vrot.lane.b32.xlu0 %v660, 17
        %v735 = vpop.permute.xlu0 %734
        %736 = vrot.lane.b32.xlu0 %v646, 17
        %v737 = vpop.permute.xlu0 %736
        %738 = vrot.lane.b32.xlu0 %v661, 17
        %v739 = vpop.permute.xlu0 %738
        %740 = vrot.lane.b32.xlu0 %v662, 17
        %v741 = vpop.permute.xlu0 %740
        %742 = vrot.lane.b32.xlu0 %v652, 17
        %v743 = vpop.permute.xlu0 %742
        %744 = vrot.lane.b32.xlu0 %v663, 17
        %v745 = vpop.permute.xlu0 %744
        %746 = vrot.lane.b32.xlu0 %v664, 17
        %v747 = vpop.permute.xlu0 %746
        %748 = vrot.lane.b32.xlu0 %v658, 17
        %v749 = vpop.permute.xlu0 %748
        %750 = vrot.lane.b32.xlu0 %v692, 17
        %v751 = vpop.permute.xlu0 %750
        %752 = vrot.lane.b32.xlu0 %v693, 17
        %v753 = vpop.permute.xlu0 %752
        %754 = vrot.lane.b32.xlu0 %v679, 17
        %v755 = vpop.permute.xlu0 %754
        %756 = vrot.lane.b32.xlu0 %v694, 17
        %v757 = vpop.permute.xlu0 %756
        %758 = vrot.lane.b32.xlu0 %v695, 17
        %v759 = vpop.permute.xlu0 %758
        %760 = vrot.lane.b32.xlu0 %v685, 17
        %v761 = vpop.permute.xlu0 %760
        %762 = vrot.lane.b32.xlu0 %v696, 17
        %v763 = vpop.permute.xlu0 %762
        %764 = vrot.lane.b32.xlu0 %v697, 17
        %v765 = vpop.permute.xlu0 %764
        %766 = vrot.lane.b32.xlu0 %v691, 17
        %v767 = vpop.permute.xlu0 %766
        %v768 = vsel %vm261, %v715, %v717
        %v769 = vsel %vm261, %v717, %v719
        %v770 = vsel %vm261, %v721, %v723
        %v771 = vsel %vm261, %v723, %v725
        %v772 = vsel %vm261, %v727, %v729
        %v773 = vsel %vm261, %v729, %v731
        %v774 = vsel %vm261, %v733, %v735
        %v775 = vsel %vm261, %v735, %v737
        %v776 = vsel %vm261, %v739, %v741
        %v777 = vsel %vm261, %v741, %v743
        %v778 = vsel %vm261, %v745, %v747
        %v779 = vsel %vm261, %v747, %v749
        %v780 = vsel %vm261, %v751, %v753
        %v781 = vsel %vm261, %v753, %v755
        %v782 = vsel %vm261, %v757, %v759
        %v783 = vsel %vm261, %v759, %v761
        %v784 = vsel %vm261, %v763, %v765
        %v785 = vsel %vm261, %v765, %v767
        %v805 = vsel %vm507, %v698, 0
        %807 = vmatprep.subr.mxu0 %v769
        %808 = vmatpush1.msra.mxu0 %v768
        %809 = vmatprep.subr.mxu0 %v771
        %810 = vmatpush1.msra.mxu0 %v770
        %811 = vmatprep.subr.mxu0 %v773
        %812 = vmatpush1.msra.mxu0 %v772
        %813 = vmatprep.subr.mxu0 %v775
        %814 = vmatpush1.msra.mxu0 %v774
        %815 = vmatprep.subr.mxu0 %v777
        %816 = vmatpush1.msra.mxu0 %v776
        %817 = vmatprep.subr.mxu0 %v779
        %818 = vmatpush1.msra.mxu0 %v778
        %819 = vmatprep.subr.mxu0 %v781
        %820 = vmatpush1.msra.mxu0 %v780
        %821 = vmatprep.subr.mxu0 %v783
        %822 = vmatpush1.msra.mxu0 %v782
        %823 = vmatprep.subr.mxu0 %v785
        %824 = vmatpush1.msra.mxu0 %v784
        %825 = vmatprep.subr.mxu0 0.0
        %826 = vmatpush1.msra.mxu0 0.0
        %827 = vmatprep.subr.mxu0 0.0
        %828 = vmatpush1.msra.mxu0 0.0
        %829 = vmatprep.subr.mxu0 0.0
        %830 = vmatpush1.msra.mxu0 0.0
        %831 = vmatprep.subr.mxu0 0.0
        %832 = vmatpush1.msra.mxu0 0.0
        %833 = vmatprep.subr.mxu0 0.0
        %834 = vmatpush1.msra.mxu0 0.0
        %835 = vmatprep.subr.mxu0 0.0
        %836 = vmatpush1.msra.mxu0 0.0
        %837 = vmatprep.subr.mxu0 0.0
        %838 = vmatpush1.msra.mxu0 0.0
        %839 = vmatprep.subr.mxu0 0.0
        %840 = vmatpush1.msra.mxu0 0.0
        %841 = vmatprep.subr.mxu0 0.0
        %842 = vmatpush1.msra.mxu0 0.0
        %843 = vmatprep.subr.mxu0 0.0
        %844 = vmatpush1.msra.mxu0 0.0
        %845 = vmatprep.subr.mxu0 0.0
        %846 = vmatpush1.msra.mxu0 0.0
        %847 = vmatprep.subr.mxu0 0.0
        %848 = vmatpush1.msra.mxu0 0.0
        %849 = vmatprep.subr.mxu0 0.0
        %850 = vmatpush1.msra.mxu0 0.0
        %851 = vmatprep.subr.mxu0 0.0
        %852 = vmatpush1.msra.mxu0 0.0
        %853 = vmatprep.subr.mxu0 0.0
        %854 = vmatpush1.msra.mxu0 0.0
        %855 = vmatprep.subr.mxu0 0.0
        %856 = vmatpush1.msra.mxu0 0.0
        %857 = vmatprep.subr.mxu0 0.0
        %858 = vmatpush1.msra.mxu0 0.0
        %859 = vmatprep.subr.mxu0 0.0
        %860 = vmatpush1.msra.mxu0 0.0
        %861 = vmatprep.subr.mxu0 0.0
        %862 = vmatpush1.msra.mxu0 0.0
        %863 = vmatprep.subr.mxu0 0.0
        %864 = vmatpush1.msra.mxu0 0.0
        %865 = vmatprep.subr.mxu0 0.0
        %866 = vmatpush1.msra.mxu0 0.0
        %867 = vmatprep.subr.mxu0 0.0
        %868 = vmatpush1.msra.mxu0 0.0
        %869 = vmatprep.subr.mxu0 0.0
        %870 = vmatpush1.msra.mxu0 0.0
        %871 = vmatprep.mubr.f32.mxu0 0.0
        %872 = vmatmul.mubr.f32.gmra.mrb[0].mxu0 %v805
        %v873 = vpop.f32.mrb[0].mxu0
        %v874 = vadd.f32 %v703, %v873
        %v875 = vpop.f32.mrb[0].mxu0
        %v876 = vadd.f32 %v703, %v875
        %877 = vdwg.mxu0
        %v878 = vmax.f32 %v874, 0.0
        %v879 = vmax.f32 %v876, 0.0
        %880 = vst [vmem:[%s240] sm:$0xff] %v878
        %881 = vst [vmem:[%s240 + $0x8] sm:$0xff] %v879
        %s882 = sand.u32 %s140, 1
        %s883 = scalar_lea.sflag [#allocation6], %s882
        %s884 = sand.u32 %s140, 1
        %s885 = smul.addr %s884, 16
        %s886 = scalar_lea.vmem [#allocation7], %s885
        // Predicated region
        $region45: #{tpu_custom_call.1} parent=39 // pred_check
          %p887 = pneg %p150
        $region46: #{tpu_custom_call.1} parent=39 // pred_check_branch
          %889 = sbr.rel (%p887) target = $region48
        $region47: #{tpu_custom_call.1} parent=39 // pred_region
          %s891 = ssub.s32 256, 256
          %892 = vsyncadd %s883, %s891
          %s893 = smul.addr %s22, 2
          %s894 = smul.addr %s893, 128
          %s895 = scalar_lea.hbm %s5, %s894
          %s897 = sshll.u32 %s886, 4
          %s898 = int_to_ptr.vmem [resolvable:$true] %s897
          %900 = dma.vmem_to_hbm [thread:$0]  %s898, 256, %s895, %s883
        $region48: #{tpu_custom_call.1} parent=39 // pred_fallthru
          _
      $region40: #{tpu_custom_call.1} parent=5 // pred_fallthru
        _
      %p901 = scmp.le.s32.totalorder 2, %s17
      // Predicated region
      $region49: #{tpu_custom_call.1} parent=5 // pred_check
        %p902 = pneg %p901
      $region50: #{tpu_custom_call.1} parent=5 // pred_check_branch
        %904 = sbr.rel (%p902) target = $region52
      $region51: #{tpu_custom_call.1} parent=5 // pred_region
        %s905 = ssub.s32 %s17, 2
        // Predicated region
        $region53: #{tpu_custom_call.1} parent=51 // pred_check
          %p906 = pneg %p156
        $region54: #{tpu_custom_call.1} parent=51 // pred_check_branch
          %908 = sbr.rel (%p906) target = $region56
        $region55: #{tpu_custom_call.1} parent=51 // pred_region
          %s909 = sand.u32 %s141, 1
          %s910 = scalar_lea.sflag [#allocation6], %s909
          %s911 = sand.u32 %s141, 1
          %s912 = smul.addr %s911, 16
          %s913 = scalar_lea.vmem [#allocation7], %s912
          %914 = dma.done %s910, 256
        $region56: #{tpu_custom_call.1} parent=51 // pred_fallthru
          _
      $region52: #{tpu_custom_call.1} parent=5 // pred_fallthru
        _
    $region6: #{tpu_custom_call.1} parent=1 // loop_footer
      %s21 = sadd.s32 1, %s17
    $region7: #{tpu_custom_call.1} parent=1 // loop_footer_branch
      %16 = sbr.rel target = $region3
    $region8: #{tpu_custom_call.1} parent=1 // loop_exit
      _
    %915 = vsyncpa [#allocation5], 1
    %s916 = scalar_lea.sflag [#allocation5], 1
    %917 = vsyncpa %s916, 1
    %918 = vsyncpa [#allocation6], 1
    %s919 = scalar_lea.sflag [#allocation6], 1
    %920 = vsyncpa %s919, 1

</llo_original>
